<compile_context>
chip_gen: v7x
topology: tpu7x:2x2x1
jax: 0.10.0
libtpu: 0.0.40
codegen_flags: <defaults>
</compile_context>

<pallas_src>
import functools
import math

import jax
import jax.numpy as jnp
import numpy as np
from jax.experimental import pallas as pl
from jax.experimental.pallas import tpu as pltpu


def _chip_tuning():
    """Bigger row tiles / scoped-VMEM on the 128-MiB parts (v5e/v6e); keep the
    conservative settings on v7x (64 MiB physical VMEM) and unknown chips."""
    try:
        kind = jax.devices()[0].device_kind.lower()
    except Exception:
        kind = ""
    if any(t in kind for t in ("v5 lite", "v5e", "v5litepod", "v6")):
        return 512, 64 * 1024 * 1024
    if any(t in kind for t in ("v7", "v5p", "v5", "v4")):
        return 256, 32 * 1024 * 1024
    return 256, None


TILE_M, VMEM_LIMIT = _chip_tuning()
MHA_Q_TILE = 256            # query tile for the attention core (2nd grid axis)


def _cparams(*sem):
    kw = dict(dimension_semantics=sem)
    if VMEM_LIMIT is not None:
        kw["vmem_limit_bytes"] = VMEM_LIMIT
    return pltpu.CompilerParams(**kw)


def _round_up(x, m):
    return ((x + m - 1) // m) * m


# ----------------------------------------------------------------------------
# Pallas kernels
# ----------------------------------------------------------------------------
def _linear_kernel(x_ref, w_ref, b_ref, o_ref, *, act):
    acc = jnp.dot(x_ref[...], w_ref[...],
                  preferred_element_type=jnp.float32) + b_ref[...]
    if act == "relu":
        acc = jnp.maximum(acc, 0.0)
    elif act == "tanh":
        acc = jnp.tanh(acc)
    o_ref[...] = acc.astype(o_ref.dtype)


def linear(x, w, b, act=None, out_dtype=jnp.bfloat16):
    """x:(...,K) @ w:(K,N) + b with optional fused relu/tanh.  bf16 activations
    in/out (default), f32 MXU accumulation.  Tiled over rows ("parallel")."""
    orig = x.shape
    K = orig[-1]
    N = w.shape[1]
    M = int(np.prod(orig[:-1]))
    x2 = x.reshape(M, K).astype(jnp.bfloat16)
    tm = M if M <= TILE_M else TILE_M
    # NOTE: weight / bias index_maps are grid-constant, so Pallas fetches them
    # only once (no re-DMA across row tiles).
    out = pl.pallas_call(
        functools.partial(_linear_kernel, act=act),
        grid=(pl.cdiv(M, tm),),
        in_specs=[pl.BlockSpec((tm, K), lambda i: (i, 0)),
                  pl.BlockSpec((K, N), lambda i: (0, 0)),
                  pl.BlockSpec((1, N), lambda i: (0, 0))],
        out_specs=pl.BlockSpec((tm, N), lambda i: (i, 0)),
        out_shape=jax.ShapeDtypeStruct((M, N), out_dtype),
        compiler_params=_cparams("parallel"),
    )(x2, w.astype(jnp.bfloat16), b.reshape(1, N).astype(jnp.float32))
    return out.reshape(orig[:-1] + (N,))


def _linear_add_ln_kernel(x_ref, w_ref, b_ref, r_ref, g_ref, be_ref, o_ref):
    h = (jnp.dot(x_ref[...], w_ref[...], preferred_element_type=jnp.float32)
         + b_ref[...] + r_ref[...].astype(jnp.float32))
    mean = jnp.mean(h, axis=-1, keepdims=True)
    var = jnp.mean((h - mean) ** 2, axis=-1, keepdims=True)
    o_ref[...] = ((h - mean) * jax.lax.rsqrt(var + 1e-5) * g_ref[...]
                  + be_ref[...]).astype(o_ref.dtype)


def linear_add_ln(x, w, b, residual, gamma, beta, out_dtype=jnp.bfloat16):
    """LayerNorm(residual + x @ w + b) fused in one kernel (LN math in f32)."""
    orig = residual.shape
    K = x.shape[-1]
    N = w.shape[1]
    M = int(np.prod(orig[:-1]))
    x2 = x.reshape(M, K).astype(jnp.bfloat16)
    r2 = residual.reshape(M, N).astype(jnp.bfloat16)
    tm = M if M <= TILE_M else TILE_M
    out = pl.pallas_call(
        _linear_add_ln_kernel,
        grid=(pl.cdiv(M, tm),),
        in_specs=[pl.BlockSpec((tm, K), lambda i: (i, 0)),
                  pl.BlockSpec((K, N), lambda i: (0, 0)),
                  pl.BlockSpec((1, N), lambda i: (0, 0)),
                  pl.BlockSpec((tm, N), lambda i: (i, 0)),
                  pl.BlockSpec((1, N), lambda i: (0, 0)),
                  pl.BlockSpec((1, N), lambda i: (0, 0))],
        out_specs=pl.BlockSpec((tm, N), lambda i: (i, 0)),
        out_shape=jax.ShapeDtypeStruct((M, N), out_dtype),
        compiler_params=_cparams("parallel"),
    )(x2, w.astype(jnp.bfloat16), b.reshape(1, N).astype(jnp.float32), r2,
      gamma.reshape(1, N).astype(jnp.float32),
      beta.reshape(1, N).astype(jnp.float32))
    return out.reshape(orig)


def _ffn_add_ln_kernel(x_ref, w1_ref, b1_ref, w2_ref, b2_ref, g_ref, be_ref, o_ref):
    x = x_ref[...]
    h = jnp.dot(x, w1_ref[...], preferred_element_type=jnp.float32) + b1_ref[...]
    h = jnp.maximum(h, 0.0).astype(jnp.bfloat16)        # (tm, Hs) stays in VMEM
    y = (jnp.dot(h, w2_ref[...], preferred_element_type=jnp.float32)
         + b2_ref[...] + x.astype(jnp.float32))          # residual = FFN input
    mean = jnp.mean(y, axis=-1, keepdims=True)
    var = jnp.mean((y - mean) ** 2, axis=-1, keepdims=True)
    o_ref[...] = ((y - mean) * jax.lax.rsqrt(var + 1e-5) * g_ref[...]
                  + be_ref[...]).astype(o_ref.dtype)


def ffn_add_ln(x, w1, b1, w2, b2, gamma, beta):
    """LayerNorm(x + relu(x@W1+b1)@W2 + b2) in a single pallas_call; the
    (M, hidden_size) intermediate never touches HBM."""
    orig = x.shape
    D = orig[-1]
    Hs = w1.shape[1]
    M = int(np.prod(orig[:-1]))
    x2 = x.reshape(M, D).astype(jnp.bfloat16)
    tm = M if M <= TILE_M else TILE_M
    out = pl.pallas_call(
        _ffn_add_ln_kernel,
        grid=(pl.cdiv(M, tm),),
        in_specs=[pl.BlockSpec((tm, D), lambda i: (i, 0)),
                  pl.BlockSpec((D, Hs), lambda i: (0, 0)),
                  pl.BlockSpec((1, Hs), lambda i: (0, 0)),
                  pl.BlockSpec((Hs, D), lambda i: (0, 0)),
                  pl.BlockSpec((1, D), lambda i: (0, 0)),
                  pl.BlockSpec((1, D), lambda i: (0, 0)),
                  pl.BlockSpec((1, D), lambda i: (0, 0))],
        out_specs=pl.BlockSpec((tm, D), lambda i: (i, 0)),
        out_shape=jax.ShapeDtypeStruct((M, D), jnp.bfloat16),
        compiler_params=_cparams("parallel"),
    )(x2, w1.astype(jnp.bfloat16), b1.reshape(1, Hs).astype(jnp.float32),
      w2.astype(jnp.bfloat16), b2.reshape(1, D).astype(jnp.float32),
      gamma.reshape(1, D).astype(jnp.float32),
      beta.reshape(1, D).astype(jnp.float32))
    return out.reshape(orig)


def _ln_kernel(x_ref, g_ref, b_ref, o_ref):
    x = x_ref[...].astype(jnp.float32)
    mean = jnp.mean(x, axis=-1, keepdims=True)
    var = jnp.mean((x - mean) ** 2, axis=-1, keepdims=True)
    o_ref[...] = ((x - mean) * jax.lax.rsqrt(var + 1e-5) * g_ref[...]
                  + b_ref[...]).astype(o_ref.dtype)


def layer_norm(x, gamma, beta, out_dtype=jnp.bfloat16):
    orig = x.shape
    D = orig[-1]
    M = int(np.prod(orig[:-1]))
    tm = M if M <= TILE_M else TILE_M
    out = pl.pallas_call(
        _ln_kernel,
        grid=(pl.cdiv(M, tm),),
        in_specs=[pl.BlockSpec((tm, D), lambda i: (i, 0)),
                  pl.BlockSpec((1, D), lambda i: (0, 0)),
                  pl.BlockSpec((1, D), lambda i: (0, 0))],
        out_specs=pl.BlockSpec((tm, D), lambda i: (i, 0)),
        out_shape=jax.ShapeDtypeStruct((M, D), out_dtype),
        compiler_params=_cparams("parallel"),
    )(x.reshape(M, D).astype(jnp.float32),
      gamma.reshape(1, D).astype(jnp.float32),
      beta.reshape(1, D).astype(jnp.float32))
    return out.reshape(orig)


def _mha_kernel(klen_ref, q_ref, k_ref, v_ref, o_ref, *rest,
                nheads, scale, causal, need_weights):
    """One (batch, q-tile) per grid step.  Heads are split in-kernel so only a
    single (tq, Tk) f32 score tile is live at a time; the key-padding / causal
    mask is built once as a 2-D compare from SMEM lengths."""
    b = pl.program_id(0)
    q = q_ref[0]                                  # (tq, D) bf16
    k = k_ref[0]                                  # (Tk, D) bf16
    v = v_ref[0]
    tq, D = q.shape
    Tk = k.shape[0]
    hd = D // nheads

    kidx = jax.lax.broadcasted_iota(jnp.int32, (tq, Tk), 1)
    valid = kidx < klen_ref[b]
    if causal:
        q0 = pl.program_id(1) * tq
        qidx = jax.lax.broadcasted_iota(jnp.int32, (tq, Tk), 0) + q0
        valid = jnp.logical_and(valid, kidx <= qidx)

    outs = []
    p_sum = None
    for h in range(nheads):                       # static unroll over heads
        qh = q[:, h * hd:(h + 1) * hd]
        kh = k[:, h * hd:(h + 1) * hd]
        vh = v[:, h * hd:(h + 1) * hd]
        s = jax.lax.dot_general(qh, kh, (((1,), (1,)), ((), ())),
                                preferred_element_type=jnp.float32) * scale
        s = jnp.where(valid, s, -1e9)             # single finite mask value
        s = s - jnp.max(s, axis=-1, keepdims=True)
        e = jnp.exp(s)
        p = e * pl.reciprocal(jnp.sum(e, axis=-1, keepdims=True), approx=True)
        outs.append(jnp.dot(p.astype(jnp.bfloat16), vh,
                            preferred_element_type=jnp.float32))
        if need_weights:
            p_sum = p if p_sum is None else p_sum + p
    # single lane-dense (tq, D) store instead of per-head HBM transposes
    o_ref[0] = jnp.concatenate(outs, axis=-1).astype(o_ref.dtype)
    if need_weights:                              # head-averaged weights only
        rest[0][0] = p_sum * (1.0 / nheads)


def mha_core(q, k, v, key_len, nheads, scale, causal, need_weights):
    """q:(B,Tq,D), k/v:(B,Tk,D) in bf16; key_len:(B,) int32 via scalar prefetch.
    Grid = (B, q_tiles), both axes "parallel" (megacore-friendly)."""
    B, Tq, D = q.shape
    Tk = k.shape[1]
    tq = Tq if Tq <= MHA_Q_TILE else MHA_Q_TILE
    nqt = pl.cdiv(Tq, tq)
    in_specs = [pl.BlockSpec((1, tq, D), lambda b, t, klen: (b, t, 0)),
                pl.BlockSpec((1, Tk, D), lambda b, t, klen: (b, 0, 0)),
                pl.BlockSpec((1, Tk, D), lambda b, t, klen: (b, 0, 0))]
    out_specs = [pl.BlockSpec((1, tq, D), lambda b, t, klen: (b, t, 0))]
    out_shape = [jax.ShapeDtypeStruct((B, Tq, D), jnp.bfloat16)]
    if need_weights:
        out_specs.append(pl.BlockSpec((1, tq, Tk), lambda b, t, klen: (b, t, 0)))
        out_shape.append(jax.ShapeDtypeStruct((B, Tq, Tk), jnp.float32))
    res = pl.pallas_call(
        functools.partial(_mha_kernel, nheads=nheads, scale=scale,
                          causal=causal, need_weights=need_weights),
        grid_spec=pltpu.PrefetchScalarGridSpec(
            num_scalar_prefetch=1, grid=(B, nqt),
            in_specs=in_specs, out_specs=out_specs),
        out_shape=out_shape,
        compiler_params=_cparams("parallel", "parallel"),
    )(key_len.astype(jnp.int32), q.astype(jnp.bfloat16),
      k.astype(jnp.bfloat16), v.astype(jnp.bfloat16))
    if need_weights:
        return res[0], res[1]
    return res[0], None


def _conv1d_kernel(x_ref, w_ref, b_ref, o_ref, *, K, T, act):
    """K-tap accumulation in-kernel (no HBM im2col).  Tap shifts use
    pltpu.roll (XLU rotate) instead of sublane-misaligned slices."""
    xf = x_ref[0]                                  # (Tp8, Cin) f32
    Tp8 = xf.shape[0]
    acc = jnp.dot(xf[:T, :].astype(jnp.bfloat16), w_ref[0],
                  preferred_element_type=jnp.float32)
    for k in range(1, K):
        xs = pltpu.roll(xf, Tp8 - k, axis=0)[:T, :]   # == rows k .. k+T-1
        acc = acc + jnp.dot(xs.astype(jnp.bfloat16), w_ref[k],
                            preferred_element_type=jnp.float32)
    acc = acc + b_ref[...]
    if act == "tanh":
        acc = jnp.tanh(acc)
    o_ref[0] = acc


def conv1d_same(x_btc, w_kio, b, pad, act=None):
    """Channels-last 'same' conv1d.  Channel dims are pre-padded to multiples
    of 128 (lane-dense stores); the time axis is padded to a multiple of 8."""
    B, T, Cin = x_btc.shape
    K, _, Cout = w_kio.shape
    Tp = T + 2 * pad
    Tp8 = _round_up(Tp, 8)
    xp = jnp.zeros((B, Tp8, Cin), jnp.float32)
    xp = xp.at[:, pad:pad + T, :].set(x_btc.astype(jnp.float32))
    # TODO(synk): add a time-tile grid axis (halo handling) for long sequences on v7x.
    return pl.pallas_call(
        functools.partial(_conv1d_kernel, K=K, T=T, act=act),
        grid=(B,),
        in_specs=[pl.BlockSpec((1, Tp8, Cin), lambda i: (i, 0, 0)),
                  pl.BlockSpec((K, Cin, Cout), lambda i: (0, 0, 0)),
                  pl.BlockSpec((1, Cout), lambda i: (0, 0))],
        out_specs=pl.BlockSpec((1, T, Cout), lambda i: (i, 0, 0)),
        out_shape=jax.ShapeDtypeStruct((B, T, Cout), jnp.float32),
        compiler_params=_cparams("parallel"),
    )(xp, w_kio.astype(jnp.bfloat16), b.reshape(1, Cout).astype(jnp.float32))


# ----------------------------------------------------------------------------
# Composite ops built on the Pallas kernels
# ----------------------------------------------------------------------------
def multihead_attention(p, q, k, v, nheads, key_len=None, causal=False,
                        need_weights=False, residual_ln=None):
    """nn.MultiheadAttention semantics (batch-first, head-averaged weights).
    Fused QKV (or KV) projection; heads split in-kernel (no XLA transposes);
    optional fused residual + LayerNorm epilogue on the output projection."""
    B, Tq, D = q.shape
    Tk = k.shape[1]
    hd = D // nheads
    if (q is k) and (k is v):                      # self-attention: one matmul
        qkv = linear(q, p["wqkv"], p["bqkv"])
        qp, kp, vp = qkv[..., :D], qkv[..., D:2 * D], qkv[..., 2 * D:]
    else:                                          # cross-attention: Q + fused KV
        qp = linear(q, p["wqkv"][:, :D], p["bqkv"][:D])
        kv = linear(k, p["wqkv"][:, D:], p["bqkv"][D:])
        kp, vp = kv[..., :D], kv[..., D:]
    if key_len is None:
        key_len = jnp.full((B,), Tk, dtype=jnp.int32)
    o, probs = mha_core(qp, kp, vp, key_len, nheads, 1.0 / math.sqrt(hd),
                        causal, need_weights)
    if residual_ln is not None:
        res, g, be = residual_ln
        out = linear_add_ln(o, p["wo"], p["bo"], res, g, be)
    else:
        out = linear(o, p["wo"], p["bo"])
    return out, probs


def avg_pool1d(x_bcl, ksize, stride):
    """x: (B, C, L) -> (B, C, Lout)  (matches F.avg_pool1d, no padding)."""
    L = x_bcl.shape[-1]
    nout = (L - ksize) // stride + 1
    idx = jnp.arange(nout)[:, None] * stride + jnp.arange(ksize)[None, :]
    return jnp.mean(x_bcl.astype(jnp.float32)[..., idx], axis=-1)


def lstm_forward(p, x):
    """Single-layer batch-first LSTM.  Input projection via the Pallas matmul;
    the inherently sequential recurrence runs under lax.scan (plain JAX)."""
    B, T, _ = x.shape
    x_proj = linear(x, p["w_ih"], p["b_ih"] + p["b_hh"], out_dtype=jnp.float32)
    w_hh = p["w_hh"]
    H = w_hh.shape[0]

    def step(carry, xt):
        h, c = carry
        gates = xt + h @ w_hh
        i, f, g, o = jnp.split(gates, 4, axis=-1)
        i = jax.nn.sigmoid(i)
        f = jax.nn.sigmoid(f)
        g = jnp.tanh(g)
        o = jax.nn.sigmoid(o)
        c = f * c + i * g
        h = o * jnp.tanh(c)
        return (h, c), h

    h0 = jnp.zeros((B, H), jnp.float32)
    c0 = jnp.zeros((B, H), jnp.float32)
    _, ys = jax.lax.scan(step, (h0, c0), jnp.swapaxes(x_proj, 0, 1))
    return jnp.swapaxes(ys, 0, 1)


def postnet_forward(postnet_params, x, nmels):
    """Tacotron2-style postnet kept in a 128-padded channel layout end to end."""
    B, T, _ = x.shape
    cin_p = postnet_params[0][0].shape[1]
    xp = jnp.zeros((B, T, cin_p), jnp.float32).at[:, :, :nmels].set(x)
    n = len(postnet_params)
    for i, (w, b) in enumerate(postnet_params):
        xp = conv1d_same(xp, w, b, pad=2, act="tanh" if i < n - 1 else None)
    return xp[..., :nmels]


def length2mask(T, length):
    """True at padded positions (matches ETTSTransformer.length2mask)."""
    return jnp.arange(T)[None, :] >= length[:, None]


def sinusoid_table(maxlen, d):
    pos = np.arange(maxlen)[:, None].astype(np.float64)
    i = np.arange(d)[None, :].astype(np.float64)
    angle = pos / np.power(10000.0, (2.0 * (i // 2)) / d)
    pe = np.where(i % 2 == 0, np.sin(angle), np.cos(angle))
    return jnp.asarray(pe, jnp.float32)


# ----------------------------------------------------------------------------
# Parameter initialization (deterministic, synthetic)
# ----------------------------------------------------------------------------
def init_params(key, cfg):
    D = cfg["d_model"]
    E = cfg["emo_embed_dim"]
    nmels = cfg["nmels"]
    Hs = cfg["hidden_size"]
    keys = iter(jax.random.split(key, 256))

    def lin(fi, fo):
        k1, k2 = next(keys), next(keys)
        w = (jax.random.normal(k1, (fi, fo), jnp.float32) / np.sqrt(fi)
             ).astype(jnp.bfloat16)                 # bf16 weights, f32 accumulate
        b = jax.random.normal(k2, (fo,), jnp.float32) * 0.01
        return (w, b)

    def mha():
        wq, bq = lin(D, D); wk, bk = lin(D, D)
        wv, bv = lin(D, D); wo, bo = lin(D, D)
        return {"wqkv": jnp.concatenate([wq, wk, wv], axis=1),   # fused QKV
                "bqkv": jnp.concatenate([bq, bk, bv]),
                "wo": wo, "bo": bo}

    def ln(dim):
        return {"g": jnp.ones((dim,), jnp.float32),
                "b": jnp.zeros((dim,), jnp.float32)}

    text_embedding = jax.random.normal(next(keys), (cfg["vocab"], D), jnp.float32) * 0.1
    text_embedding = text_embedding.at[cfg["pad_idx"]].set(0.0)   # padding_idx row = 0

    # mel_linear + stop_pred fused and padded to a lane-dense 128-wide output
    wm, bm = lin(D, nmels)
    ws, bs = lin(D, 1)
    n_out = nmels + 1
    n_pad = _round_up(n_out, 128)
    w_out = jnp.zeros((D, n_pad), jnp.bfloat16)
    w_out = w_out.at[:, :nmels].set(wm).at[:, nmels:n_out].set(ws)
    b_out = jnp.zeros((n_pad,), jnp.float32).at[:nmels].set(bm).at[nmels].set(bs[0])

    params = {
        "text_embedding": text_embedding,
        "global_style_embedding": jax.random.normal(next(keys), (cfg["ngst"], D), jnp.float32) * 0.1,
        "local_style_embedding": jax.random.normal(next(keys), (cfg["nlst"], D), jnp.float32) * 0.1,
        "text_norm": ln(D),
        "pos_table": sinusoid_table(cfg["maxlength"], D),
        # TODO(synk): EmotionPrenet definition not provided; 2-layer MLP + masked mean-pool used.
        "eg_prenet1": lin(E, D),
        "eg_prenet2": lin(D, D),
        "emotion_global_attn": mha(),
        "emotion_local_attn": mha(),
        "lstm": {
            "w_ih": (jax.random.normal(next(keys), (E, 4 * D), jnp.float32) / np.sqrt(E)
                     ).astype(jnp.bfloat16),
            "w_hh": jax.random.normal(next(keys), (D, 4 * D), jnp.float32) / np.sqrt(D),
            "b_ih": jnp.zeros((4 * D,), jnp.float32),
            "b_hh": jnp.zeros((4 * D,), jnp.float32),
        },
        # TODO(synk): DecoderPrenet definition not provided; bottleneck MLP used.
        "dec_prenet1": lin(nmels, D // 8),
        "dec_prenet2": lin(D // 8, D),
        "w_out": w_out,
        "b_out": b_out,
        "encoder": [],
        "decoder": [],
        "postnet": [],
    }
    # TODO(synk): PairedTransformerEncoderLayer / TransformerDecoderLayer source not
    # provided; standard post-LN transformer layers with emotion cross-attention used.
    for _ in range(cfg["nlayers"]):
        params["encoder"].append(dict(
            sa=mha(), ca_local=mha(), ca_global=mha(),
            ffn1=lin(D, Hs), ffn2=lin(Hs, D),
            ln1=ln(D), ln2=ln(D), ln3=ln(D), ln4=ln(D)))
        params["decoder"].append(dict(
            sa=mha(), ca=mha(),
            ffn1=lin(D, Hs), ffn2=lin(Hs, D),
            ln1=ln(D), ln2=ln(D), ln3=ln(D)))
    # TODO(synk): Postnet definition not provided; Tacotron2-style 5x conv1d(k=5) used.
    K = 5
    channels = [nmels, D, D, D, D, nmels]
    for i in range(5):
        cin, cout = channels[i], channels[i + 1]
        cin_p, cout_p = _round_up(cin, 128), _round_up(cout, 128)
        kw, kb = next(keys), next(keys)
        w = (jax.random.normal(kw, (K, cin, cout), jnp.float32)
             / np.sqrt(K * cin)).astype(jnp.bfloat16)
        b = jax.random.normal(kb, (cout,), jnp.float32) * 0.01
        w_p = jnp.zeros((K, cin_p, cout_p), jnp.bfloat16).at[:, :cin, :cout].set(w)
        b_p = jnp.zeros((cout_p,), jnp.float32).at[:cout].set(b)
        params["postnet"].append((w_p, b_p))
    return params


# ----------------------------------------------------------------------------
# Full forward pass
# ----------------------------------------------------------------------------
def etts_forward(params, emotion_global, emotion_local, text_ids, mels,
                 length_emo_global, length_emo_local, length_text, length_mels, cfg):
    D, H = cfg["d_model"], cfg["nheads"]
    nmels = cfg["nmels"]
    B = text_ids.shape[0]

    # --- text path: embedding -> layernorm -> pos embedding ---
    t = params["text_embedding"][text_ids]                              # (B, Tt, D)
    t = layer_norm(t, params["text_norm"]["g"], params["text_norm"]["b"])
    t = t + params["pos_table"][None, :t.shape[1], :].astype(t.dtype)

    # --- global emotion path ---
    Tg = emotion_global.shape[1]
    eg = linear(emotion_global, *params["eg_prenet1"], act="relu")      # fused relu
    eg = linear(eg, *params["eg_prenet2"], act="relu")
    valid = (jnp.arange(Tg)[None, :] < length_emo_global[:, None]
             ).astype(jnp.float32)[..., None]
    eg = (jnp.sum(eg.astype(jnp.float32) * valid, axis=1, keepdims=True)
          / jnp.maximum(jnp.sum(valid, axis=1, keepdims=True), 1.0))    # (B, 1, D)
    gkeys = jnp.tanh(params["global_style_embedding"])[None]
    gkeys = jnp.broadcast_to(gkeys, (B,) + gkeys.shape[1:])
    eg, _ = multihead_attention(params["emotion_global_attn"], eg, gkeys, gkeys, 4)

    # --- local emotion path ---
    el = lstm_forward(params["lstm"], emotion_local)                    # (B, Tl, D)
    lkeys = jnp.tanh(params["local_style_embedding"])[None]
    lkeys = jnp.broadcast_to(lkeys, (B,) + lkeys.shape[1:])
    el, _ = multihead_attention(params["emotion_local_attn"], el, lkeys, lkeys, 4)
    stride, ksize = 4, 8
    el = avg_pool1d(jnp.swapaxes(el, 1, 2), ksize, stride)              # (B, D, Lp)
    el_bf = jnp.transpose(el, (0, 2, 1))                                # (B, Lp, D)
    Lp = el_bf.shape[1]
    # TODO(synk): random.randint crop is a training-time augmentation; deterministic no-op here.
    d_len = jnp.minimum(length_emo_local // stride + 1, Lp).astype(jnp.int32)

    # --- paired encoder ---
    x = t
    enc_attn = None
    nl = len(params["encoder"])
    for li, lp in enumerate(params["encoder"]):
        last = li == nl - 1
        x, _ = multihead_attention(lp["sa"], x, x, x, H, key_len=length_text,
                                   residual_ln=(x, lp["ln1"]["g"], lp["ln1"]["b"]))
        x, w_ca = multihead_attention(lp["ca_local"], x, el_bf, el_bf, H,
                                      key_len=d_len, need_weights=last,
                                      residual_ln=(x, lp["ln2"]["g"], lp["ln2"]["b"]))
        if last:
            enc_attn = w_ca
        x, _ = multihead_attention(lp["ca_global"], x, eg, eg, H,
                                   residual_ln=(x, lp["ln3"]["g"], lp["ln3"]["b"]))
        x = ffn_add_ln(x, lp["ffn1"][0], lp["ffn1"][1],
                       lp["ffn2"][0], lp["ffn2"][1],
                       lp["ln4"]["g"], lp["ln4"]["b"])
    enc_gloss = jnp.float32(0.0)   # TODO(synk): guided-attention loss definition not provided
    src = x

    # --- decoder prenet / shift-right ---
    m = linear(mels, *params["dec_prenet1"], act="relu")
    m = linear(m, *params["dec_prenet2"], act="relu")                   # (B, Tm, D)
    # TODO(synk): prenet dropout(0.2) omitted for a deterministic forward.
    m = m + params["pos_table"][None, :m.shape[1], :].astype(m.dtype)
    mel_padding_mask = length2mask(m.shape[1], length_mels)             # (B, Tm)
    m = m + eg                                                          # broadcast global emotion
    m = jnp.concatenate([jnp.zeros_like(m[:, :1]), m[:, :-1]], axis=1)  # shift right

    # --- decoder ---
    y = m
    attn = None
    dec_attn = None
    nd = len(params["decoder"])
    for li, lp in enumerate(params["decoder"]):
        last = li == nd - 1
        y, w_sa = multihead_attention(lp["sa"], y, y, y, H, key_len=length_mels,
                                      causal=True, need_weights=last,
                                      residual_ln=(y, lp["ln1"]["g"], lp["ln1"]["b"]))
        if last:
            dec_attn = w_sa
        y, w_ca = multihead_attention(lp["ca"], y, src, src, H, key_len=length_text,
                                      need_weights=last,
                                      residual_ln=(y, lp["ln2"]["g"], lp["ln2"]["b"]))
        if last:
            attn = w_ca
        y = ffn_add_ln(y, lp["ffn1"][0], lp["ffn1"][1],
                       lp["ffn2"][0], lp["ffn2"][1],
                       lp["ln3"]["g"], lp["ln3"]["b"])
    ed_gloss = jnp.float32(0.0)    # TODO(synk): guided-attention loss definition not provided
    gloss = ed_gloss + enc_gloss

    # fused, lane-dense mel_linear + stop_pred (output padded to 128 columns)
    og = linear(y, params["w_out"], params["b_out"], out_dtype=jnp.float32)
    mel_out = og[..., :nmels]
    gate_logit = og[..., nmels]

    # --- postnet residual (stop-gradient mimics .detach()) ---
    p_det = jax.lax.stop_gradient(mel_out)
    mel_out_post = p_det + postnet_forward(params["postnet"], p_det, nmels)

    return (mel_out, mel_out_post, gate_logit, mel_padding_mask,
            gloss, attn, enc_attn, dec_attn)


# ----------------------------------------------------------------------------
if __name__ == "__main__":
    cfg = dict(d_model=32, hidden_size=64, nlayers=2, nheads=4,
               emo_embed_dim=16, nmels=8, maxlength=64,
               vocab=10, pad_idx=0, ngst=8, nlst=8)

    key = jax.random.PRNGKey(0)
    kp, k1, k2, k3, k4 = jax.random.split(key, 5)
    params = init_params(kp, cfg)

    B, Tt, Tm, Tg, Tl = 2, 12, 16, 10, 40
    text = jax.random.randint(k1, (B, Tt), 1, cfg["vocab"])
    mels = jax.random.normal(k2, (B, Tm, cfg["nmels"]), jnp.float32)
    emotion_global = jax.random.normal(k3, (B, Tg, cfg["emo_embed_dim"]), jnp.float32)
    emotion_local = jax.random.normal(k4, (B, Tl, cfg["emo_embed_dim"]), jnp.float32)
    length_text = jnp.array([12, 9], jnp.int32)
    length_mels = jnp.array([16, 12], jnp.int32)
    length_emo_global = jnp.array([10, 7], jnp.int32)
    length_emo_local = jnp.array([40, 30], jnp.int32)

    outs = etts_forward(params, emotion_global, emotion_local, text, mels,
                        length_emo_global, length_emo_local, length_text,
                        length_mels, cfg)
    jax.block_until_ready(outs)
    print("KERNEL_OK")
</pallas_src>

<mosaic_0001>
module attributes {stable_mosaic.version = 11 : i64} {
  func.func @_ln_kernel(%arg0: i32, %arg1: memref<24x32xf32, #tpu.memory_space<vmem>>, %arg2: memref<1x32xf32, #tpu.memory_space<vmem>>, %arg3: memref<1x32xf32, #tpu.memory_space<vmem>>, %arg4: memref<24x32xbf16, #tpu.memory_space<vmem>>) attributes {dimension_semantics = [#tpu.dimension_semantics<parallel>], iteration_bounds = array<i64: 1>, scalar_prefetch = 0 : i64, scratch_operands = 0 : i64, tpu.core_type = #tpu.core_type<tc>, window_params = [{transform_indices = @transform_0, window_bounds = array<i64: 24, 32>}, {pipeline_mode = #tpu.pipeline_mode<synchronous>, transform_indices = @transform_1, window_bounds = array<i64: 1, 32>}, {pipeline_mode = #tpu.pipeline_mode<synchronous>, transform_indices = @transform_2, window_bounds = array<i64: 1, 32>}, {transform_indices = @transform_3, window_bounds = array<i64: 24, 32>}]} {
    %c0 = arith.constant 0 : index
    %c0_0 = arith.constant 0 : index
    %0 = vector.load %arg1[%c0, %c0_0] : memref<24x32xf32, #tpu.memory_space<vmem>>, vector<24x32xf32>
    %cst = arith.constant dense<0.000000e+00> : vector<24xf32>
    %1 = vector.multi_reduction <add>, %0, %cst [1] : vector<24x32xf32> to vector<24xf32>
    %2 = vector.shape_cast %1 : vector<24xf32> to vector<24x1xf32>
    %cst_1 = arith.constant 3.200000e+01 : f32
    %3 = vector.broadcast %cst_1 : f32 to vector<24x1xf32>
    %4 = arith.divf %2, %3 : vector<24x1xf32>
    %5 = vector.broadcast %4 : vector<24x1xf32> to vector<24x32xf32>
    %6 = arith.subf %0, %5 : vector<24x32xf32>
    %7 = arith.mulf %6, %6 : vector<24x32xf32>
    %cst_2 = arith.constant dense<0.000000e+00> : vector<24xf32>
    %8 = vector.multi_reduction <add>, %7, %cst_2 [1] : vector<24x32xf32> to vector<24xf32>
    %9 = vector.shape_cast %8 : vector<24xf32> to vector<24x1xf32>
    %cst_3 = arith.constant 3.200000e+01 : f32
    %10 = vector.broadcast %cst_3 : f32 to vector<24x1xf32>
    %11 = arith.divf %9, %10 : vector<24x1xf32>
    %12 = vector.broadcast %4 : vector<24x1xf32> to vector<24x32xf32>
    %13 = arith.subf %0, %12 : vector<24x32xf32>
    %cst_4 = arith.constant 9.99999974E-6 : f32
    %14 = vector.broadcast %cst_4 : f32 to vector<24x1xf32>
    %15 = arith.addf %11, %14 : vector<24x1xf32>
    %16 = math.rsqrt %15 : vector<24x1xf32>
    %17 = vector.broadcast %16 : vector<24x1xf32> to vector<24x32xf32>
    %18 = arith.mulf %13, %17 : vector<24x32xf32>
    %c0_5 = arith.constant 0 : index
    %c0_6 = arith.constant 0 : index
    %19 = vector.load %arg2[%c0_5, %c0_6] : memref<1x32xf32, #tpu.memory_space<vmem>>, vector<1x32xf32>
    %20 = vector.broadcast %19 : vector<1x32xf32> to vector<24x32xf32>
    %21 = arith.mulf %18, %20 : vector<24x32xf32>
    %c0_7 = arith.constant 0 : index
    %c0_8 = arith.constant 0 : index
    %22 = vector.load %arg3[%c0_7, %c0_8] : memref<1x32xf32, #tpu.memory_space<vmem>>, vector<1x32xf32>
    %23 = vector.broadcast %22 : vector<1x32xf32> to vector<24x32xf32>
    %24 = arith.addf %21, %23 : vector<24x32xf32>
    %25 = arith.truncf %24 : vector<24x32xf32> to vector<24x32xbf16>
    %c0_9 = arith.constant 0 : index
    %c0_10 = arith.constant 0 : index
    %26 = vector.load %arg4[%c0_9, %c0_10] : memref<24x32xbf16, #tpu.memory_space<vmem>>, vector<24x32xbf16>
    tpu.vector_store %arg4[%c0_9, %c0_10], %25 {strides = array<i32>} : memref<24x32xbf16, #tpu.memory_space<vmem>>, vector<24x32xbf16>,
    return
  }
  func.func @transform_0(%arg0: i32) -> (i32, i32) {
    %c0_i32 = arith.constant 0 : i32
    %c0_i32_0 = arith.constant 0 : i32
    return %arg0, %c0_i32 : i32, i32
  }
  func.func @transform_1(%arg0: i32) -> (i32, i32) {
    %c0_i32 = arith.constant 0 : i32
    %c0_i32_0 = arith.constant 0 : i32
    %c0_i32_1 = arith.constant 0 : i32
    return %c0_i32, %c0_i32_0 : i32, i32
  }
  func.func @transform_2(%arg0: i32) -> (i32, i32) {
    %c0_i32 = arith.constant 0 : i32
    %c0_i32_0 = arith.constant 0 : i32
    %c0_i32_1 = arith.constant 0 : i32
    return %c0_i32, %c0_i32_0 : i32, i32
  }
  func.func @transform_3(%arg0: i32) -> (i32, i32) {
    %c0_i32 = arith.constant 0 : i32
    %c0_i32_0 = arith.constant 0 : i32
    return %arg0, %c0_i32 : i32, i32
  }
}

</mosaic_0001>

<llo_original>
// kernel: tpu_custom_call.1
$region0: #{tpu_custom_call.1}
  #allocation0 [shape = 'u32[]', space=smem, size = 0x4, offset = 0x4, fixed_abs, tag = 'smem constant byte address 0x4 - core index']
  #allocation1 [shape = 'u32[144,128]{1,0:T(1,128)}', space=vmem, size = 0x12000, scoped, tag = 'internal scratch']
  %s0 = inlined_call_operand.hbm [shape: f32[24,32], index: 0, kind: input, shape index: {}]
  %s1 = inlined_call_operand.vmem [shape: f32[1,32], index: 1, kind: input, shape index: {}]
  %s2 = inlined_call_operand.vmem [shape: f32[1,32], index: 2, kind: input, shape index: {}]
  %s3 = inlined_call_operand.hbm [shape: bf16[24,32], index: 3, kind: output, shape index: {}]
  %s4 = sld [smem:[#allocation0]]
  $region26: #{tpu_custom_call.1} parent=0
    _
  %s6 = ssub.s32 1, %s4
  %s7 = scalar_select 0, %s6, %s4
  $region1: #{tpu_custom_call.1} parent=0
    #allocation2 [shape = 'u8[12288]{0}', space=vmem, size = 0x3000, scoped, tag = 'input window, operand 0, single buffered']
    #allocation3 [shape = 's32[1]{0}', space=sflag, size = 0x4, scoped, tag = 'scoped memory for tpu_custom_call.1']
    #allocation4 [shape = 's32[1]{0}', space=sflag, size = 0x4, scoped, tag = 'scoped memory for tpu_custom_call.1']
    #allocation5 [shape = 'u8[6144]{0}', space=vmem, size = 0x1800, scoped, tag = 'output window, operand 0, single buffered']
    %8 = vsyncpa [#allocation3], 0
    %9 = vsyncpa [#allocation4], 0
    // Predicated region
    $region2: #{tpu_custom_call.1} parent=1 // pred_check
      _
    $region3: #{tpu_custom_call.1} parent=1 // pred_check_branch
      %11 = sbr.rel (0) target = $region5
    $region4: #{tpu_custom_call.1} parent=1 // pred_region
      %s13 = ssub.s32 384, 384
      %14 = vsyncadd [#allocation3], %s13
      %s15 = sshll.u32 [#allocation2], 4
      %s16 = int_to_ptr.vmem [resolvable:$true] %s15
      %21 = dma.hbm_to_vmem [thread:$0]  %s0, 384, %s16, [#allocation3], 128, 128, 8
    $region5: #{tpu_custom_call.1} parent=1 // pred_fallthru
      _
    // Predicated region
    $region6: #{tpu_custom_call.1} parent=1 // pred_check
      _
    $region7: #{tpu_custom_call.1} parent=1 // pred_check_branch
      %23 = sbr.rel (0) target = $region9
    $region8: #{tpu_custom_call.1} parent=1 // pred_region
      _
    $region9: #{tpu_custom_call.1} parent=1 // pred_fallthru
      _
    // Predicated region
    $region10: #{tpu_custom_call.1} parent=1 // pred_check
      _
    $region11: #{tpu_custom_call.1} parent=1 // pred_check_branch
      %25 = sbr.rel (0) target = $region13
    $region12: #{tpu_custom_call.1} parent=1 // pred_region
      _
    $region13: #{tpu_custom_call.1} parent=1 // pred_fallthru
      _
    // Predicated region
    $region14: #{tpu_custom_call.1} parent=1 // pred_check
      _
    $region15: #{tpu_custom_call.1} parent=1 // pred_check_branch
      %27 = sbr.rel (0) target = $region17
    $region16: #{tpu_custom_call.1} parent=1 // pred_region
      %28 = dma.done [#allocation3], 384
    $region17: #{tpu_custom_call.1} parent=1 // pred_fallthru
      _
    %v29 = vld [vmem:[#allocation2] sm:$0xff]
    %v30 = vld [vmem:[#allocation2 + $0x8] sm:$0xff]
    %v31 = vld [vmem:[#allocation2 + $0x10] sm:$0xff]
    %vm32 = vcmask 261120
    %v33 = vsel %vm32, %v29, 0.0
    %34 = vadd.xlane.f32.xlu0 %v33
    %v35 = vpop.xlane.xlu0 %34
    %v36 = vsel %vm32, %v30, 0.0
    %37 = vadd.xlane.f32.xlu0 %v36
    %v38 = vpop.xlane.xlu0 %37
    %v39 = vsel %vm32, %v31, 0.0
    %40 = vadd.xlane.f32.xlu0 %v39
    %v41 = vpop.xlane.xlu0 %40
    %v42 = vrcp.pop 32.0
    %v43 = vmul.f32 %v35, %v42
    %v44 = vmul.f32 %v38, %v42
    %v45 = vmul.f32 %v41, %v42
    %v46 = vsub.f32 %v29, %v43
    %v47 = vsub.f32 %v30, %v44
    %v48 = vsub.f32 %v31, %v45
    %v49 = vmul.f32 %v46, %v46
    %v50 = vmul.f32 %v47, %v47
    %v51 = vmul.f32 %v48, %v48
    %v52 = vsel %vm32, %v49, 0.0
    %53 = vadd.xlane.f32.xlu0 %v52
    %v54 = vpop.xlane.xlu0 %53
    %v55 = vsel %vm32, %v50, 0.0
    %56 = vadd.xlane.f32.xlu0 %v55
    %v57 = vpop.xlane.xlu0 %56
    %v58 = vsel %vm32, %v51, 0.0
    %59 = vadd.xlane.f32.xlu0 %v58
    %v60 = vpop.xlane.xlu0 %59
    %v61 = vmul.f32 %v54, %v42
    %v62 = vmul.f32 %v57, %v42
    %v63 = vmul.f32 %v60, %v42
    %v64 = vadd.f32 %v61, 1e-05
    %v65 = vadd.f32 %v62, 1e-05
    %v66 = vadd.f32 %v63, 1e-05
    %v67 = vrsqrt.pop %v64
    %v68 = vrsqrt.pop %v65
    %v69 = vrsqrt.pop %v66
    %v70 = vmul.f32 %v46, %v67
    %v71 = vmul.f32 %v47, %v68
    %v72 = vmul.f32 %v48, %v69
    %v73 = vld [vmem:[%s1] sm:$0x1]
    %v75 = vlaneseq
    %v76 = vshrl.u32 %v75, 7
    %v77 = vsub.s32 0, %v76
    %v78 = vrot.slane %v73, %v77
    %v80 = vmul.f32 %v70, %v78
    %v81 = vmul.f32 %v71, %v78
    %v82 = vmul.f32 %v72, %v78
    %v83 = vld [vmem:[%s2] sm:$0x1]
    %v85 = vlaneseq
    %v86 = vshrl.u32 %v85, 7
    %v87 = vsub.s32 0, %v86
    %v88 = vrot.slane %v83, %v87
    %v90 = vadd.f32 %v80, %v88
    %v91 = vadd.f32 %v81, %v88
    %v92 = vadd.f32 %v82, %v88
    %v93 = vpack.c.bf16 %v91, %v90
    %v94 = vpack.c.bf16 %v92, %v92
    %v97 = vunpack.c.l.b16 %v93
    %v98 = vunpack.c.h.b16 %v93
    %v99 = vunpack.c.l.b16 %v94
    %v100 = vpack.c.b16 %v97, %v97
    %v101 = vpack.c.b16 %v98, %v98
    %v102 = vpack.c.b16 %v99, %v99
    %vm106 = vcmask 257024
    %107 = vst.msk [vmem:[#allocation5] sm:$0xf] %vm106, %v100
    %108 = vst.msk [vmem:[#allocation5 + $0x4] sm:$0xf] %vm106, %v101
    %109 = vst.msk [vmem:[#allocation5 + $0x8] sm:$0xf] %vm106, %v102
    // Predicated region
    $region18: #{tpu_custom_call.1} parent=1 // pred_check
      _
    $region19: #{tpu_custom_call.1} parent=1 // pred_check_branch
      %111 = sbr.rel (0) target = $region21
    $region20: #{tpu_custom_call.1} parent=1 // pred_region
      %s113 = ssub.s32 192, 192
      %114 = vsyncadd [#allocation4], %s113
      %s115 = sshll.u32 [#allocation5], 4
      %s116 = int_to_ptr.vmem [resolvable:$true] %s115
      %121 = dma.vmem_to_hbm [thread:$0]  %s116, 192, %s3, [#allocation4], 64, 64, 4
    $region21: #{tpu_custom_call.1} parent=1 // pred_fallthru
      _
    // Predicated region
    $region22: #{tpu_custom_call.1} parent=1 // pred_check
      _
    $region23: #{tpu_custom_call.1} parent=1 // pred_check_branch
      %123 = sbr.rel (0) target = $region25
    $region24: #{tpu_custom_call.1} parent=1 // pred_region
      %124 = dma.done [#allocation4], 192
    $region25: #{tpu_custom_call.1} parent=1 // pred_fallthru
      _
    %125 = vsyncpa [#allocation3], 1
    %126 = vsyncpa [#allocation4], 1

</llo_original>
